<compile_context>
chip_gen: v6e
topology: v6e:2x2x1
jax: 0.10.0
libtpu: 0.0.40
codegen_flags: <defaults>
</compile_context>

<pallas_src>
import functools

import jax
import jax.numpy as jnp
from jax import lax
from jax.experimental import pallas as pl
from jax.experimental.pallas import tpu as pltpu


def _encoder_kernel(x_ref, adj_ref, w0_ref, wr_ref, p_ref, out_ref,
                    h_ref, hw_ref, *, eps, tm):
    """Grid = (layer l, adj row block i).  Scratch h/hw persist across the grid."""
    l = pl.program_id(0)
    i = pl.program_id(1)
    nb = pl.num_programs(1)

    # ---- layer prologue (first row block): hw = h @ W_l^T, bf16 operands, f32 acc ----
    @pl.when(jnp.logical_and(l == 0, i == 0))
    def _():
        hw_ref[...] = jnp.dot(
            x_ref[...].astype(jnp.bfloat16), w0_ref[...],
            preferred_element_type=jnp.float32).astype(jnp.bfloat16)

    @pl.when(jnp.logical_and(l > 0, i == 0))
    def _():
        hw_ref[...] = jnp.dot(
            h_ref[...].astype(jnp.bfloat16), wr_ref[0],
            preferred_element_type=jnp.float32).astype(jnp.bfloat16)

    # Per-layer packed params: rows = (gcn bias, bn gamma, bn beta, prelu alpha).
    p = p_ref[0]                                   # (4, D) f32
    bias, gamma, beta, alpha = p[0:1], p[1:2], p[2:3], p[3:4]

    # ---- row block: graph propagation (MXU) + GCN bias + PReLU (f32) ----
    z = jnp.dot(adj_ref[...], hw_ref[...],
                preferred_element_type=jnp.float32) + bias          # (TM, D) f32
    z = jnp.where(z >= 0.0, z, alpha * z)                           # PReLU

    row0 = i * tm
    if tm % 8 == 0:
        row0 = pl.multiple_of(row0, tm)
    h_ref[pl.ds(row0, tm), :] = z                  # stash pre-BN activation rows

    # ---- layer epilogue (last row block): BatchNorm1d over all N nodes ----
    @pl.when(i == nb - 1)
    def _():
        h = h_ref[...]                                              # (N, D) f32 pre-BN
        mean = jnp.mean(h, axis=0, keepdims=True)
        hc = h - mean
        var = jnp.mean(hc * hc, axis=0, keepdims=True)              # biased, two-pass
        hn = hc * (gamma * lax.rsqrt(var + eps)) + beta
        h_ref[...] = hn                                             # next layer's input
        out_ref[0] = hn.astype(out_ref.dtype)                       # per-layer output


def _pick_row_block(n, adj_elt_bytes=2):
    """Row-block size for streaming adj; whole-resident when it comfortably fits VMEM."""
    resident_budget = 24 << 20           # conservative: double-buffered bf16 adj, all gens
    if 2 * n * n * adj_elt_bytes <= resident_budget:
        return n                         # constant index map -> adj DMA'd once, reused L times
    stream_budget = 24 << 20
    tm = max(8, min(512, stream_budget // (2 * adj_elt_bytes * n)))
    tm = (tm // 8) * 8
    while tm >= 8:                       # need tm % 8 == 0 and tm | n (8,128 tiling rule)
        if n % tm == 0:
            return tm
        tm -= 8
    return n                             # no aligned divisor: fall back to whole rows


def encoder_fused(x, adj, w0_t, w_rest_t, params, *, eps=1e-5):
    """x: (N, dim_in) f32, adj: (N, N). Returns (L, N, dim_out) f32 per-layer outputs."""
    n, dim_in = x.shape
    num_layers = params.shape[0]
    d_out = w0_t.shape[1]

    adj = adj.astype(jnp.bfloat16)       # halve the dominant HBM->VMEM transfer
    tm = _pick_row_block(n)
    nb = n // tm
    grid = (num_layers, nb)

    kernel = functools.partial(_encoder_kernel, eps=eps, tm=tm)

    # Explicit scoped-VMEM budget: adj row blocks (x2 buffers) + resident x + out block
    # (x2) + h/hw scratch, with ~30% headroom.  Clamped to a sane range.
    footprint = (2 * tm * n * 2          # adj blocks, bf16, double-buffered
                 + 2 * n * dim_in * 4    # x, resident
                 + 2 * n * d_out * 4     # output block, double-buffered
                 + n * d_out * 4         # h scratch (f32)
                 + n * d_out * 2         # hw scratch (bf16)
                 + (1 << 20))            # weights / params / slack
    vmem_limit = int(min(max(footprint * 13 // 10, 32 << 20), 120 << 20))

    cost = pl.CostEstimate(
        flops=(2 * num_layers * n * n * d_out
               + 2 * n * dim_in * d_out
               + 2 * max(num_layers - 1, 0) * n * d_out * d_out),
        transcendentals=num_layers * d_out,
        bytes_accessed=((num_layers if nb > 1 else 1) * n * n * 2
                        + n * dim_in * 4
                        + num_layers * n * d_out * 4),
    )

    return pl.pallas_call(
        kernel,
        out_shape=jax.ShapeDtypeStruct((num_layers, n, d_out), jnp.float32),
        grid_spec=pltpu.PrefetchScalarGridSpec(
            num_scalar_prefetch=0,
            grid=grid,
            in_specs=[
                pl.BlockSpec((n, dim_in), lambda l, i: (0, 0)),            # x (resident)
                pl.BlockSpec((tm, n), lambda l, i: (i, 0)),                # adj row blocks
                pl.BlockSpec((dim_in, d_out), lambda l, i: (0, 0)),        # W0^T (resident)
                pl.BlockSpec((1, d_out, d_out),
                             lambda l, i: (jnp.maximum(l - 1, 0), 0, 0)),  # W_l^T, l>=1
                pl.BlockSpec((1, 4, d_out), lambda l, i: (l, 0, 0)),       # bias/gamma/beta/alpha
            ],
            out_specs=pl.BlockSpec((1, n, d_out), lambda l, i: (l, 0, 0)),
            scratch_shapes=[
                pltpu.VMEM((n, d_out), jnp.float32),    # h: carried node features
                pltpu.VMEM((n, d_out), jnp.bfloat16),   # hw: h @ W_l^T for current layer
            ],
        ),
        compiler_params=pltpu.CompilerParams(
            dimension_semantics=("arbitrary", "arbitrary"),
            vmem_limit_bytes=vmem_limit,
        ),
        cost_estimate=cost,
    )(x, adj, w0_t, w_rest_t, params)


def init_encoder_params(key, dim_in=32, dim_out=32, num_gc_layers=5):
    """Deterministic synthetic init mirroring the module's parameter shapes."""
    w_t = []
    for i in range(num_gc_layers):
        start_dim = dim_out if i else dim_in       # layer0: dim_in->dim_out, rest: dim_out->dim_out
        key, k1 = jax.random.split(key)
        limit = (6.0 / (start_dim + dim_out)) ** 0.5     # xavier_uniform_
        w = jax.random.uniform(k1, (dim_out, start_dim), jnp.float32, -limit, limit)
        w_t.append(w.T)                            # hoist W^T transpose out of the kernel
    w0_t = w_t[0].astype(jnp.bfloat16)                             # (dim_in, dim_out)
    if num_gc_layers > 1:
        w_rest_t = jnp.stack(w_t[1:]).astype(jnp.bfloat16)         # (L-1, dim_out, dim_out)
    else:
        w_rest_t = jnp.zeros((1, dim_out, dim_out), jnp.bfloat16)  # placeholder (never read)
    bias = jnp.zeros((num_gc_layers, dim_out), jnp.float32)        # GCN bias .fill_(0.0)
    gamma = jnp.ones((num_gc_layers, dim_out), jnp.float32)        # BatchNorm1d weight
    beta = jnp.zeros((num_gc_layers, dim_out), jnp.float32)        # BatchNorm1d bias
    alpha = jnp.full((num_gc_layers, dim_out), 0.25, jnp.float32)  # PReLU default alpha
    params = jnp.stack([bias, gamma, beta, alpha], axis=1)         # (L, 4, dim_out)
    return (w0_t, w_rest_t, params)


def encoder_forward(x, adj, params, *, eps=1e-5):
    """x: (1, N, dim_in), adj: (1, N, N) dense (sparse=False -> torch.bmm path).

    Returns (x_last, concat_enc) matching the PyTorch Encoder.forward.
    """
    w0_t, w_rest_t, p = params
    out_lnd = encoder_fused(x[0], adj[0], w0_t, w_rest_t, p, eps=eps)   # (L, N, D)
    x_last = out_lnd[-1][None]                                          # (1, N, D)
    n = out_lnd.shape[1]
    # torch.cat(xs, 2): per node, layer-0 features first, then layer-1, ...
    concat_enc = jnp.transpose(out_lnd, (1, 0, 2)).reshape(n, -1)[None]  # (1, N, L*D)
    return x_last, concat_enc


if __name__ == "__main__":
    key = jax.random.PRNGKey(0)
    kx, ka, kp = jax.random.split(key, 3)

    N, DIM, NUM_LAYERS = 16, 32, 5
    x = jax.random.normal(kx, (1, N, DIM), jnp.float32)
    adj_raw = jax.random.uniform(ka, (1, N, N), jnp.float32)
    adj = adj_raw / jnp.sum(adj_raw, axis=-1, keepdims=True)   # any dense adjacency works

    params = init_encoder_params(kp, dim_in=DIM, dim_out=DIM, num_gc_layers=NUM_LAYERS)
    x_last, concat_enc = encoder_forward(x, adj, params)
    jax.block_until_ready((x_last, concat_enc))
    assert x_last.shape == (1, N, DIM)
    assert concat_enc.shape == (1, N, NUM_LAYERS * DIM)
    assert bool(jnp.all(jnp.isfinite(x_last))) and bool(jnp.all(jnp.isfinite(concat_enc)))
    print("KERNEL_OK")
</pallas_src>

<mosaic_0001>
module attributes {stable_mosaic.version = 11 : i64} {
  func.func @_encoder_kernel(%arg0: i32, %arg1: i32, %arg2: memref<16x32xf32, #tpu.memory_space<vmem>>, %arg3: memref<16x16xbf16, #tpu.memory_space<vmem>>, %arg4: memref<32x32xbf16, #tpu.memory_space<vmem>>, %arg5: memref<1x32x32xbf16, #tpu.memory_space<vmem>>, %arg6: memref<1x4x32xf32, #tpu.memory_space<vmem>>, %arg7: memref<1x16x32xf32, #tpu.memory_space<vmem>>, %arg8: memref<16x32xf32, #tpu.memory_space<vmem>>, %arg9: memref<16x32xbf16, #tpu.memory_space<vmem>>) attributes {dimension_semantics = [#tpu.dimension_semantics<arbitrary>, #tpu.dimension_semantics<arbitrary>], iteration_bounds = array<i64: 5, 1>, scalar_prefetch = 0 : i64, scratch_operands = 2 : i64, tpu.core_type = #tpu.core_type<tc>, window_params = [{pipeline_mode = #tpu.pipeline_mode<synchronous>, transform_indices = @transform_0, window_bounds = array<i64: 16, 32>}, {transform_indices = @transform_1, window_bounds = array<i64: 16, 16>}, {pipeline_mode = #tpu.pipeline_mode<synchronous>, transform_indices = @transform_2, window_bounds = array<i64: 32, 32>}, {transform_indices = @transform_3, window_bounds = array<i64: 1, 32, 32>}, {transform_indices = @transform_4, window_bounds = array<i64: 1, 4, 32>}, {transform_indices = @transform_5, window_bounds = array<i64: 1, 16, 32>}]} {
    %c0_i32 = arith.constant 0 : i32
    %0 = arith.cmpi eq, %arg0, %c0_i32 : i32
    %c0_i32_0 = arith.constant 0 : i32
    %1 = arith.cmpi eq, %arg1, %c0_i32_0 : i32
    %2 = arith.andi %0, %1 : i1
    %3 = arith.extui %2 : i1 to i32
    %c0_i32_1 = arith.constant 0 : i32
    %4 = arith.cmpi ne, %3, %c0_i32_1 : i32
    scf.if %4 {
      %c0_15 = arith.constant 0 : index
      %c0_16 = arith.constant 0 : index
      %33 = vector.load %arg2[%c0_15, %c0_16] : memref<16x32xf32, #tpu.memory_space<vmem>>, vector<16x32xf32>
      %34 = arith.truncf %33 : vector<16x32xf32> to vector<16x32xbf16>
      %c0_17 = arith.constant 0 : index
      %c0_18 = arith.constant 0 : index
      %35 = vector.load %arg4[%c0_17, %c0_18] : memref<32x32xbf16, #tpu.memory_space<vmem>>, vector<32x32xbf16>
      %cst_19 = arith.constant dense<0.000000e+00> : vector<16x32xf32>
      %36 = tpu.matmul %34, %35, %cst_19 {dimension_numbers = #tpu.dot_dimension_numbers<[1], [0], [0], [1], [0, 0, 1, 1], [], []>} : vector<16x32xbf16>, vector<32x32xbf16>, vector<16x32xf32> -> vector<16x32xf32>
      %37 = arith.truncf %36 : vector<16x32xf32> to vector<16x32xbf16>
      %c0_20 = arith.constant 0 : index
      %c0_21 = arith.constant 0 : index
      %38 = vector.load %arg9[%c0_20, %c0_21] : memref<16x32xbf16, #tpu.memory_space<vmem>>, vector<16x32xbf16>
      tpu.vector_store %arg9[%c0_20, %c0_21], %37 {strides = array<i32>} : memref<16x32xbf16, #tpu.memory_space<vmem>>, vector<16x32xbf16>,
    } else {
    }
    %c0_i32_2 = arith.constant 0 : i32
    %5 = arith.cmpi sgt, %arg0, %c0_i32_2 : i32
    %c0_i32_3 = arith.constant 0 : i32
    %6 = arith.cmpi eq, %arg1, %c0_i32_3 : i32
    %7 = arith.andi %5, %6 : i1
    %8 = arith.extui %7 : i1 to i32
    %c0_i32_4 = arith.constant 0 : i32
    %9 = arith.cmpi ne, %8, %c0_i32_4 : i32
    scf.if %9 {
      %c0_15 = arith.constant 0 : index
      %c0_16 = arith.constant 0 : index
      %33 = vector.load %arg8[%c0_15, %c0_16] : memref<16x32xf32, #tpu.memory_space<vmem>>, vector<16x32xf32>
      %34 = arith.truncf %33 : vector<16x32xf32> to vector<16x32xbf16>
      %c0_17 = arith.constant 0 : index
      %c0_18 = arith.constant 0 : index
      %c0_19 = arith.constant 0 : index
      %35 = vector.load %arg5[%c0_17, %c0_18, %c0_19] : memref<1x32x32xbf16, #tpu.memory_space<vmem>>, vector<1x32x32xbf16>
      %36 = vector.shape_cast %35 : vector<1x32x32xbf16> to vector<32x32xbf16>
      %cst_20 = arith.constant dense<0.000000e+00> : vector<16x32xf32>
      %37 = tpu.matmul %34, %36, %cst_20 {dimension_numbers = #tpu.dot_dimension_numbers<[1], [0], [0], [1], [0, 0, 1, 1], [], []>} : vector<16x32xbf16>, vector<32x32xbf16>, vector<16x32xf32> -> vector<16x32xf32>
      %38 = arith.truncf %37 : vector<16x32xf32> to vector<16x32xbf16>
      %c0_21 = arith.constant 0 : index
      %c0_22 = arith.constant 0 : index
      %39 = vector.load %arg9[%c0_21, %c0_22] : memref<16x32xbf16, #tpu.memory_space<vmem>>, vector<16x32xbf16>
      tpu.vector_store %arg9[%c0_21, %c0_22], %38 {strides = array<i32>} : memref<16x32xbf16, #tpu.memory_space<vmem>>, vector<16x32xbf16>,
    } else {
    }
    %c0 = arith.constant 0 : index
    %c0_5 = arith.constant 0 : index
    %c0_6 = arith.constant 0 : index
    %10 = vector.load %arg6[%c0, %c0_5, %c0_6] : memref<1x4x32xf32, #tpu.memory_space<vmem>>, vector<1x4x32xf32>
    %11 = vector.shape_cast %10 : vector<1x4x32xf32> to vector<4x32xf32>
    %12 = vector.extract_strided_slice %11 {offsets = [0, 0], sizes = [1, 32], strides = [1, 1]} : vector<4x32xf32> to vector<1x32xf32>
    %13 = vector.extract_strided_slice %11 {offsets = [1, 0], sizes = [1, 32], strides = [1, 1]} : vector<4x32xf32> to vector<1x32xf32>
    %14 = vector.extract_strided_slice %11 {offsets = [2, 0], sizes = [1, 32], strides = [1, 1]} : vector<4x32xf32> to vector<1x32xf32>
    %15 = vector.extract_strided_slice %11 {offsets = [3, 0], sizes = [1, 32], strides = [1, 1]} : vector<4x32xf32> to vector<1x32xf32>
    %c0_7 = arith.constant 0 : index
    %c0_8 = arith.constant 0 : index
    %16 = vector.load %arg3[%c0_7, %c0_8] : memref<16x16xbf16, #tpu.memory_space<vmem>>, vector<16x16xbf16>
    %c0_9 = arith.constant 0 : index
    %c0_10 = arith.constant 0 : index
    %17 = vector.load %arg9[%c0_9, %c0_10] : memref<16x32xbf16, #tpu.memory_space<vmem>>, vector<16x32xbf16>
    %cst = arith.constant dense<0.000000e+00> : vector<16x32xf32>
    %18 = tpu.matmul %16, %17, %cst {dimension_numbers = #tpu.dot_dimension_numbers<[1], [0], [0], [1], [0, 0, 1, 1], [], []>} : vector<16x16xbf16>, vector<16x32xbf16>, vector<16x32xf32> -> vector<16x32xf32>
    %19 = vector.broadcast %12 : vector<1x32xf32> to vector<16x32xf32>
    %20 = arith.addf %18, %19 : vector<16x32xf32>
    %cst_11 = arith.constant 0.000000e+00 : f32
    %21 = vector.broadcast %cst_11 : f32 to vector<16x32xf32>
    %22 = arith.cmpf oge, %20, %21 : vector<16x32xf32>
    %23 = vector.broadcast %15 : vector<1x32xf32> to vector<16x32xf32>
    %24 = arith.mulf %23, %20 : vector<16x32xf32>
    %25 = arith.select %22, %20, %24 : vector<16x32xi1>, vector<16x32xf32>
    %c16_i32 = arith.constant 16 : i32
    %26 = arith.muli %arg1, %c16_i32 : i32
    %27 = tpu.assume_multiple %26, 16 : i32
    %28 = arith.index_cast %27 : i32 to index
    %c0_12 = arith.constant 0 : index
    %29 = vector.load %arg8[%28, %c0_12] : memref<16x32xf32, #tpu.memory_space<vmem>>, vector<16x32xf32>
    tpu.vector_store %arg8[%28, %c0_12], %25 {strides = array<i32>} : memref<16x32xf32, #tpu.memory_space<vmem>>, vector<16x32xf32>,
    %c0_i32_13 = arith.constant 0 : i32
    %30 = arith.cmpi eq, %arg1, %c0_i32_13 : i32
    %31 = arith.extui %30 : i1 to i32
    %c0_i32_14 = arith.constant 0 : i32
    %32 = arith.cmpi ne, %31, %c0_i32_14 : i32
    scf.if %32 {
      %c0_15 = arith.constant 0 : index
      %c0_16 = arith.constant 0 : index
      %33 = vector.load %arg8[%c0_15, %c0_16] : memref<16x32xf32, #tpu.memory_space<vmem>>, vector<16x32xf32>
      %cst_17 = arith.constant dense<0.000000e+00> : vector<32xf32>
      %34 = vector.multi_reduction <add>, %33, %cst_17 [0] : vector<16x32xf32> to vector<32xf32>
      %35 = vector.shape_cast %34 : vector<32xf32> to vector<1x32xf32>
      %cst_18 = arith.constant 1.600000e+01 : f32
      %36 = vector.broadcast %cst_18 : f32 to vector<1x32xf32>
      %37 = arith.divf %35, %36 : vector<1x32xf32>
      %38 = vector.broadcast %37 : vector<1x32xf32> to vector<16x32xf32>
      %39 = arith.subf %33, %38 : vector<16x32xf32>
      %40 = arith.mulf %39, %39 : vector<16x32xf32>
      %cst_19 = arith.constant dense<0.000000e+00> : vector<32xf32>
      %41 = vector.multi_reduction <add>, %40, %cst_19 [0] : vector<16x32xf32> to vector<32xf32>
      %42 = vector.shape_cast %41 : vector<32xf32> to vector<1x32xf32>
      %cst_20 = arith.constant 1.600000e+01 : f32
      %43 = vector.broadcast %cst_20 : f32 to vector<1x32xf32>
      %44 = arith.divf %42, %43 : vector<1x32xf32>
      %cst_21 = arith.constant 9.99999974E-6 : f32
      %45 = vector.broadcast %cst_21 : f32 to vector<1x32xf32>
      %46 = arith.addf %44, %45 : vector<1x32xf32>
      %47 = math.rsqrt %46 : vector<1x32xf32>
      %48 = arith.mulf %13, %47 : vector<1x32xf32>
      %49 = vector.broadcast %48 : vector<1x32xf32> to vector<16x32xf32>
      %50 = arith.mulf %39, %49 : vector<16x32xf32>
      %51 = vector.broadcast %14 : vector<1x32xf32> to vector<16x32xf32>
      %52 = arith.addf %50, %51 : vector<16x32xf32>
      %c0_22 = arith.constant 0 : index
      %c0_23 = arith.constant 0 : index
      %53 = vector.load %arg8[%c0_22, %c0_23] : memref<16x32xf32, #tpu.memory_space<vmem>>, vector<16x32xf32>
      tpu.vector_store %arg8[%c0_22, %c0_23], %52 {strides = array<i32>} : memref<16x32xf32, #tpu.memory_space<vmem>>, vector<16x32xf32>,
      %c0_24 = arith.constant 0 : index
      %c0_25 = arith.constant 0 : index
      %c0_26 = arith.constant 0 : index
      %54 = vector.load %arg7[%c0_24, %c0_25, %c0_26] : memref<1x16x32xf32, #tpu.memory_space<vmem>>, vector<1x16x32xf32>
      %55 = vector.shape_cast %54 : vector<1x16x32xf32> to vector<16x32xf32>
      %56 = vector.shape_cast %52 : vector<16x32xf32> to vector<1x16x32xf32>
      tpu.vector_store %arg7[%c0_24, %c0_25, %c0_26], %56 {strides = array<i32>} : memref<1x16x32xf32, #tpu.memory_space<vmem>>, vector<1x16x32xf32>,
    } else {
    }
    return
  }
  func.func @transform_0(%arg0: i32, %arg1: i32) -> (i32, i32) {
    %c0_i32 = arith.constant 0 : i32
    %c0_i32_0 = arith.constant 0 : i32
    %c0_i32_1 = arith.constant 0 : i32
    return %c0_i32, %c0_i32_0 : i32, i32
  }
  func.func @transform_1(%arg0: i32, %arg1: i32) -> (i32, i32) {
    %c0_i32 = arith.constant 0 : i32
    %c0_i32_0 = arith.constant 0 : i32
    return %arg1, %c0_i32 : i32, i32
  }
  func.func @transform_2(%arg0: i32, %arg1: i32) -> (i32, i32) {
    %c0_i32 = arith.constant 0 : i32
    %c0_i32_0 = arith.constant 0 : i32
    %c0_i32_1 = arith.constant 0 : i32
    return %c0_i32, %c0_i32_0 : i32, i32
  }
  func.func @transform_3(%arg0: i32, %arg1: i32) -> (i32, i32, i32) {
    %c1_i32 = arith.constant 1 : i32
    %0 = arith.subi %arg0, %c1_i32 : i32
    %c0_i32 = arith.constant 0 : i32
    %1 = arith.maxsi %0, %c0_i32 : i32
    %c0_i32_0 = arith.constant 0 : i32
    %c0_i32_1 = arith.constant 0 : i32
    %c0_i32_2 = arith.constant 0 : i32
    return %1, %c0_i32_0, %c0_i32_1 : i32, i32, i32
  }
  func.func @transform_4(%arg0: i32, %arg1: i32) -> (i32, i32, i32) {
    %c0_i32 = arith.constant 0 : i32
    %c0_i32_0 = arith.constant 0 : i32
    %c0_i32_1 = arith.constant 0 : i32
    return %arg0, %c0_i32, %c0_i32_0 : i32, i32, i32
  }
  func.func @transform_5(%arg0: i32, %arg1: i32) -> (i32, i32, i32) {
    %c0_i32 = arith.constant 0 : i32
    %c0_i32_0 = arith.constant 0 : i32
    %c0_i32_1 = arith.constant 0 : i32
    return %arg0, %c0_i32, %c0_i32_0 : i32, i32, i32
  }
}

</mosaic_0001>

<llo_original>
// kernel: tpu_custom_call.1
$region0: #{tpu_custom_call.1}
  #allocation0 [shape = 'u32[]', space=smem, size = 0x4, offset = 0x4, fixed_abs, tag = 'smem constant byte address 0x4 - core index']
  #allocation1 [shape = 'u32[144,128]{1,0:T(1,128)}', space=vmem, size = 0x12000, scoped, tag = 'internal scratch']
  #allocation2 [shape = 'f32[16,32]{1,0:T(8,128)}', space=vmem, size = 0x2000, scoped, tag = 'scratch operand']
  #allocation3 [shape = 'bf16[16,32]{1,0:T(8,128)(2,1)}', space=vmem, size = 0x1000, scoped, tag = 'scratch operand']
  %s0 = inlined_call_operand.hbm [shape: f32[16,32], index: 0, kind: input, shape index: {}]
  %s1 = inlined_call_operand.hbm [shape: bf16[16,16], index: 1, kind: input, shape index: {}]
  %s2 = inlined_call_operand.hbm [shape: bf16[32,32], index: 2, kind: input, shape index: {}]
  %s3 = inlined_call_operand.hbm [shape: bf16[4,32,32], index: 3, kind: input, shape index: {}]
  %s4 = inlined_call_operand.hbm [shape: f32[5,4,32], index: 4, kind: input, shape index: {}]
  %s5 = inlined_call_operand.hbm [shape: f32[5,16,32], index: 5, kind: output, shape index: {}]
  %s6 = sld [smem:[#allocation0]]
  $region85: #{tpu_custom_call.1} parent=0
    _
  %s8 = ssub.s32 1, %s6
  %s9 = scalar_select 0, %s8, %s6
  $region1: #{tpu_custom_call.1} parent=0
    #allocation4 [shape = 'u8[8192]{0}', space=vmem, size = 0x2000, scoped, tag = 'input window, operand 0, single buffered']
    #allocation5 [shape = 's32[2]{0}', space=sflag, size = 0x8, scoped, tag = 'scoped memory for tpu_custom_call.1']
    #allocation6 [shape = 's32[2]{0}', space=sflag, size = 0x8, scoped, tag = 'scoped memory for tpu_custom_call.1']
    #allocation7 [shape = 'u8[4096]{0}', space=vmem, size = 0x1000, scoped, tag = 'input window, operand 1, single buffered']
    #allocation8 [shape = 's32[1]{0}', space=sflag, size = 0x4, scoped, tag = 'scoped memory for tpu_custom_call.1']
    #allocation9 [shape = 'u8[8192]{0}', space=vmem, size = 0x2000, scoped, tag = 'input window, operand 2, single buffered']
    #allocation10 [shape = 'u8[16384]{0}', space=vmem, size = 0x4000, scoped, tag = 'input window, operand 3']
    #allocation11 [shape = 's32[2]{0}', space=sflag, size = 0x8, scoped, tag = 'scoped memory for tpu_custom_call.1']
    #allocation12 [shape = 'u8[4096]{0}', space=vmem, size = 0x1000, scoped, tag = 'input window, operand 4']
    #allocation13 [shape = 'u8[16384]{0}', space=vmem, size = 0x4000, scoped, tag = 'output window, operand 0']
    %10 = vsyncpa [#allocation5], 0
    %11 = vsyncpa [#allocation8], 0
    %12 = vsyncpa [#allocation11], 0
    %s13 = scalar_lea.sflag [#allocation11], 1
    %14 = vsyncpa %s13, 0
    %15 = vsyncpa [#allocation6], 0
    %s16 = scalar_lea.sflag [#allocation6], 1
    %17 = vsyncpa %s16, 0
    loop: start=0, step=1, limit=7
    $region2: #{tpu_custom_call.1} parent=1 // loop_pre_header
      _
    $region3: #{tpu_custom_call.1} parent=1 // loop_header
      %s19 = sphi 0, %s23
      %p20 = scmp.ge.s32.totalorder %s19, 7
      %s26 = sphi 0, %s38
      %s27 = sphi 0, %s34
      %s28 = sphi 0, %s26
      %s29 = sphi 0, %s27
      %s30 = sphi 0, %s28
      %s31 = sphi 0, %s29
      %s39 = sphi 0, %s39
      %s41 = sphi 0, %s39
      %s42 = sphi 0, %s41
      %s56 = sphi 0, %s42
      %s62 = sphi 0, %s64
      %s65 = sphi 0, %s62
      %s66 = sphi 0, %s65
      %s82 = sphi 0, %s66
      %s86 = sphi 0, %s86
      %s88 = sphi 0, %s86
      %s89 = sphi 0, %s88
      %s103 = sphi 0, %s89
      %s115 = sphi 0, %s117
      %s118 = sphi 0, %s115
      %s119 = sphi 0, %s118
      %s135 = sphi 0, %s119
      %s141 = sphi 0, %s143
      %s144 = sphi 0, %s141
      %s145 = sphi 0, %s144
      %s161 = sphi 0, %s145
      %s167 = sphi 0, %s169
      %s170 = sphi 0, %s167
      %s171 = sphi 0, %s170
      %s187 = sphi 0, %s171
    $region4: #{tpu_custom_call.1} parent=1 // loop_header_branch
      %22 = sbr.rel (%p20) target = $region8
    $region5: #{tpu_custom_call.1} parent=1 // loop_body
      %s24 = ssub.s32 %s19, 1
      %s25 = ssub.s32 %s19, 2
      %s32 = sadd.s32 1, %s27
      %p33 = scmp.ge.s32.totalorder %s32, 1
      %s34 = scalar_select %p33, 0, %s32
      %s35 = sadd.s32 1, %s26
      %s36 = scalar_select %p33, %s35, %s26
      %p37 = scmp.ge.s32.totalorder %s36, 5
      %s38 = scalar_select %p37, 0, %s36
      %s40 = sadd.s32 %s39, 1
      %p43 = scmp.eq.s32.totalorder %s19, 4
      %p44 = scmp.ne.s32.totalorder %s39, %s41
      %p45 = scmp.eq.s32.totalorder %s19, 0
      %p46 = por %p44, %p45
      %p47 = scmp.ne.s32.totalorder %s39, %s41
      %p48 = scmp.eq.s32.totalorder %s24, 4
      %p49 = por %p47, %p48
      %p50 = scmp.ne.s32.totalorder %s41, %s42
      %p51 = scmp.eq.s32.totalorder %s24, 0
      %p52 = por %p50, %p51
      %p53 = scmp.ne.s32.totalorder %s41, %s42
      %p54 = scmp.eq.s32.totalorder %s25, 4
      %p55 = por %p53, %p54
      %p57 = scmp.ne.s32.totalorder %s42, %s56
      %p58 = scmp.eq.s32.totalorder %s25, 0
      %p59 = por %p57, %p58
      %s60 = ssub.s32 %s27, %s34
      %p61 = scmp.eq.s32.totalorder %s60, 0
      %s63 = sadd.s32 %s62, 1
      %s64 = scalar_select %p61, %s62, %s63
      %p67 = pneg %p61
      %p68 = scmp.eq.s32.totalorder %s19, 4
      %p69 = por %p67, %p68
      %p70 = scmp.ne.s32.totalorder %s62, %s65
      %p71 = scmp.eq.s32.totalorder %s19, 0
      %p72 = por %p70, %p71
      %p73 = scmp.ne.s32.totalorder %s62, %s65
      %p74 = scmp.eq.s32.totalorder %s24, 4
      %p75 = por %p73, %p74
      %p76 = scmp.ne.s32.totalorder %s65, %s66
      %p77 = scmp.eq.s32.totalorder %s24, 0
      %p78 = por %p76, %p77
      %p79 = scmp.ne.s32.totalorder %s65, %s66
      %p80 = scmp.eq.s32.totalorder %s25, 4
      %p81 = por %p79, %p80
      %p83 = scmp.ne.s32.totalorder %s66, %s82
      %p84 = scmp.eq.s32.totalorder %s25, 0
      %p85 = por %p83, %p84
      %s87 = sadd.s32 %s86, 1
      %p90 = scmp.eq.s32.totalorder %s19, 4
      %p91 = scmp.ne.s32.totalorder %s86, %s88
      %p92 = scmp.eq.s32.totalorder %s19, 0
      %p93 = por %p91, %p92
      %p94 = scmp.ne.s32.totalorder %s86, %s88
      %p95 = scmp.eq.s32.totalorder %s24, 4
      %p96 = por %p94, %p95
      %p97 = scmp.ne.s32.totalorder %s88, %s89
      %p98 = scmp.eq.s32.totalorder %s24, 0
      %p99 = por %p97, %p98
      %p100 = scmp.ne.s32.totalorder %s88, %s89
      %p101 = scmp.eq.s32.totalorder %s25, 4
      %p102 = por %p100, %p101
      %p104 = scmp.ne.s32.totalorder %s89, %s103
      %p105 = scmp.eq.s32.totalorder %s25, 0
      %p106 = por %p104, %p105
      %s107 = ssub.s32 %s26, 1
      %p108 = scmp.gt.s32.totalorder %s107, 0
      %s109 = scalar_select %p108, %s107, 0
      %s110 = ssub.s32 %s38, 1
      %p111 = scmp.gt.s32.totalorder %s110, 0
      %s112 = scalar_select %p111, %s110, 0
      %s113 = ssub.s32 %s109, %s112
      %p114 = scmp.eq.s32.totalorder %s113, 0
      %s116 = sadd.s32 %s115, 1
      %s117 = scalar_select %p114, %s115, %s116
      %p120 = pneg %p114
      %p121 = scmp.eq.s32.totalorder %s19, 4
      %p122 = por %p120, %p121
      %p123 = scmp.ne.s32.totalorder %s115, %s118
      %p124 = scmp.eq.s32.totalorder %s19, 0
      %p125 = por %p123, %p124
      %p126 = scmp.ne.s32.totalorder %s115, %s118
      %p127 = scmp.eq.s32.totalorder %s24, 4
      %p128 = por %p126, %p127
      %p129 = scmp.ne.s32.totalorder %s118, %s119
      %p130 = scmp.eq.s32.totalorder %s24, 0
      %p131 = por %p129, %p130
      %p132 = scmp.ne.s32.totalorder %s118, %s119
      %p133 = scmp.eq.s32.totalorder %s25, 4
      %p134 = por %p132, %p133
      %p136 = scmp.ne.s32.totalorder %s119, %s135
      %p137 = scmp.eq.s32.totalorder %s25, 0
      %p138 = por %p136, %p137
      %s139 = ssub.s32 %s26, %s38
      %p140 = scmp.eq.s32.totalorder %s139, 0
      %s142 = sadd.s32 %s141, 1
      %s143 = scalar_select %p140, %s141, %s142
      %p146 = pneg %p140
      %p147 = scmp.eq.s32.totalorder %s19, 4
      %p148 = por %p146, %p147
      %p149 = scmp.ne.s32.totalorder %s141, %s144
      %p150 = scmp.eq.s32.totalorder %s19, 0
      %p151 = por %p149, %p150
      %p152 = scmp.ne.s32.totalorder %s141, %s144
      %p153 = scmp.eq.s32.totalorder %s24, 4
      %p154 = por %p152, %p153
      %p155 = scmp.ne.s32.totalorder %s144, %s145
      %p156 = scmp.eq.s32.totalorder %s24, 0
      %p157 = por %p155, %p156
      %p158 = scmp.ne.s32.totalorder %s144, %s145
      %p159 = scmp.eq.s32.totalorder %s25, 4
      %p160 = por %p158, %p159
      %p162 = scmp.ne.s32.totalorder %s145, %s161
      %p163 = scmp.eq.s32.totalorder %s25, 0
      %p164 = por %p162, %p163
      %s165 = ssub.s32 %s26, %s38
      %p166 = scmp.eq.s32.totalorder %s165, 0
      %s168 = sadd.s32 %s167, 1
      %s169 = scalar_select %p166, %s167, %s168
      %p172 = pneg %p166
      %p173 = scmp.eq.s32.totalorder %s19, 4
      %p174 = por %p172, %p173
      %p175 = scmp.ne.s32.totalorder %s167, %s170
      %p176 = scmp.eq.s32.totalorder %s19, 0
      %p177 = por %p175, %p176
      %p178 = scmp.ne.s32.totalorder %s167, %s170
      %p179 = scmp.eq.s32.totalorder %s24, 4
      %p180 = por %p178, %p179
      %p181 = scmp.ne.s32.totalorder %s170, %s171
      %p182 = scmp.eq.s32.totalorder %s24, 0
      %p183 = por %p181, %p182
      %p184 = scmp.ne.s32.totalorder %s170, %s171
      %p185 = scmp.eq.s32.totalorder %s25, 4
      %p186 = por %p184, %p185
      %p188 = scmp.ne.s32.totalorder %s171, %s187
      %p189 = scmp.eq.s32.totalorder %s25, 0
      %p190 = por %p188, %p189
      %p191 = scmp.le.s32.totalorder 1, %s19
      %p192 = scmp.lt.s32.totalorder %s19, 6
      %p193 = pnand %p191, %p192
      %p194 = pneg %p193
      // Predicated region
      $region9: #{tpu_custom_call.1} parent=5 // pred_check
        _
      $region10: #{tpu_custom_call.1} parent=5 // pred_check_branch
        %196 = sbr.rel (%p193) target = $region12
      $region11: #{tpu_custom_call.1} parent=5 // pred_region
        %s197 = ssub.s32 %s19, 1
        // Predicated region
        $region13: #{tpu_custom_call.1} parent=11 // pred_check
          %p198 = pneg %p52
        $region14: #{tpu_custom_call.1} parent=11 // pred_check_branch
          %200 = sbr.rel (%p198) target = $region16
        $region15: #{tpu_custom_call.1} parent=11 // pred_region
          %s202 = ssub.s32 256, 256
          %203 = vsyncadd [#allocation5], %s202
          %s204 = sshll.u32 [#allocation4], 4
          %s205 = int_to_ptr.vmem [resolvable:$true] %s204
          %210 = dma.hbm_to_vmem [thread:$0]  %s0, 256, %s205, [#allocation5], 128, 128, 8
        $region16: #{tpu_custom_call.1} parent=11 // pred_fallthru
          _
        // Predicated region
        $region17: #{tpu_custom_call.1} parent=11 // pred_check
          %p211 = pneg %p78
        $region18: #{tpu_custom_call.1} parent=11 // pred_check_branch
          %213 = sbr.rel (%p211) target = $region20
        $region19: #{tpu_custom_call.1} parent=11 // pred_region
          %s214 = smul.u32 2, %s29
          %s216 = ssub.s32 128, 128
          %217 = vsyncadd [#allocation8], %s216
          %s218 = smul.addr %s214, 64
          %s219 = scalar_lea.hbm %s1, %s218
          %s220 = sshll.u32 [#allocation7], 4
          %s221 = int_to_ptr.vmem [resolvable:$true] %s220
          %226 = dma.hbm_to_vmem [thread:$0]  %s219, 128, %s221, [#allocation8], 64, 64, 4
        $region20: #{tpu_custom_call.1} parent=11 // pred_fallthru
          _
        // Predicated region
        $region21: #{tpu_custom_call.1} parent=11 // pred_check
          %p227 = pneg %p99
        $region22: #{tpu_custom_call.1} parent=11 // pred_check_branch
          %229 = sbr.rel (%p227) target = $region24
        $region23: #{tpu_custom_call.1} parent=11 // pred_region
          %s231 = ssub.s32 256, 256
          %232 = vsyncadd [#allocation8], %s231
          %s233 = sshll.u32 [#allocation9], 4
          %s234 = int_to_ptr.vmem [resolvable:$true] %s233
          %239 = dma.hbm_to_vmem [thread:$0]  %s2, 256, %s234, [#allocation8], 64, 64, 4
        $region24: #{tpu_custom_call.1} parent=11 // pred_fallthru
          _
      $region12: #{tpu_custom_call.1} parent=5 // pred_fallthru
        _
      %p240 = scmp.lt.s32.totalorder %s19, 5
      // Predicated region
      $region25: #{tpu_custom_call.1} parent=5 // pred_check
        %p241 = pneg %p240
      $region26: #{tpu_custom_call.1} parent=5 // pred_check_branch
        %243 = sbr.rel (%p241) target = $region28
      $region27: #{tpu_custom_call.1} parent=5 // pred_region
        // Predicated region
        $region29: #{tpu_custom_call.1} parent=27 // pred_check
          %p244 = pneg %p125
        $region30: #{tpu_custom_call.1} parent=27 // pred_check_branch
          %246 = sbr.rel (%p244) target = $region32
        $region31: #{tpu_custom_call.1} parent=27 // pred_region
          %s247 = sand.u32 %s19, 1
          %s248 = scalar_lea.sflag [#allocation11], %s247
          %s249 = sand.u32 %s115, 1
          %s250 = smul.addr %s249, 16
          %s251 = scalar_lea.vmem [#allocation10], %s250
          %s252 = ssub.s32 %s26, 1
          %p253 = scmp.gt.s32.totalorder %s252, 0
          %s254 = scalar_select %p253, %s252, 0
          %s256 = ssub.s32 256, 256
          %257 = vsyncadd %s248, %s256
          %s258 = smul.addr %s254, 4
          %s259 = smul.addr %s258, 64
          %s260 = scalar_lea.hbm %s3, %s259
          %s261 = sshll.u32 %s251, 4
          %s262 = int_to_ptr.vmem [resolvable:$true] %s261
          %267 = dma.hbm_to_vmem [thread:$0]  %s260, 256, %s262, %s248, 64, 64, 4
        $region32: #{tpu_custom_call.1} parent=27 // pred_fallthru
          _
        // Predicated region
        $region33: #{tpu_custom_call.1} parent=27 // pred_check
          %p268 = pneg %p151
        $region34: #{tpu_custom_call.1} parent=27 // pred_check_branch
          %270 = sbr.rel (%p268) target = $region36
        $region35: #{tpu_custom_call.1} parent=27 // pred_region
          %s271 = sand.u32 %s19, 1
          %s272 = scalar_lea.sflag [#allocation11], %s271
          %s273 = sand.u32 %s141, 1
          %s274 = smul.addr %s273, 4
          %s275 = scalar_lea.vmem [#allocation12], %s274
          %s277 = ssub.s32 64, 64
          %278 = vsyncadd %s272, %s277
          %s279 = smul.addr %s26, 64
          %s280 = scalar_lea.hbm %s4, %s279
          %s282 = sshll.u32 %s275, 4
          %s283 = int_to_ptr.vmem [resolvable:$true] %s282
          %285 = dma.hbm_to_vmem [thread:$0]  %s280, 64, %s283, %s272
        $region36: #{tpu_custom_call.1} parent=27 // pred_fallthru
          _
      $region28: #{tpu_custom_call.1} parent=5 // pred_fallthru
        _
      %p286 = scmp.le.s32.totalorder 1, %s19
      %p287 = scmp.lt.s32.totalorder %s19, 6
      %p288 = pnand %p286, %p287
      %p289 = pneg %p288
      // Predicated region
      $region37: #{tpu_custom_call.1} parent=5 // pred_check
        _
      $region38: #{tpu_custom_call.1} parent=5 // pred_check_branch
        %291 = sbr.rel (%p288) target = $region40
      $region39: #{tpu_custom_call.1} parent=5 // pred_region
        %s292 = ssub.s32 %s19, 1
        // Predicated region
        $region41: #{tpu_custom_call.1} parent=39 // pred_check
          %p293 = pneg %p52
        $region42: #{tpu_custom_call.1} parent=39 // pred_check_branch
          %295 = sbr.rel (%p293) target = $region44
        $region43: #{tpu_custom_call.1} parent=39 // pred_region
          %296 = dma.done [#allocation5], 256
        $region44: #{tpu_custom_call.1} parent=39 // pred_fallthru
          _
        // Predicated region
        $region45: #{tpu_custom_call.1} parent=39 // pred_check
          %p297 = pneg %p78
        $region46: #{tpu_custom_call.1} parent=39 // pred_check_branch
          %299 = sbr.rel (%p297) target = $region48
        $region47: #{tpu_custom_call.1} parent=39 // pred_region
          %300 = dma.done [#allocation8], 128
        $region48: #{tpu_custom_call.1} parent=39 // pred_fallthru
          _
        // Predicated region
        $region49: #{tpu_custom_call.1} parent=39 // pred_check
          %p301 = pneg %p99
        $region50: #{tpu_custom_call.1} parent=39 // pred_check_branch
          %303 = sbr.rel (%p301) target = $region52
        $region51: #{tpu_custom_call.1} parent=39 // pred_region
          %304 = dma.done [#allocation8], 256
        $region52: #{tpu_custom_call.1} parent=39 // pred_fallthru
          _
        %s305 = sand.u32 %s24, 1
        %s306 = scalar_lea.sflag [#allocation11], %s305
        %s307 = sand.u32 %s118, 1
        %s308 = smul.addr %s307, 16
        %s309 = scalar_lea.vmem [#allocation10], %s308
        // Predicated region
        $region53: #{tpu_custom_call.1} parent=39 // pred_check
          %p310 = pneg %p131
        $region54: #{tpu_custom_call.1} parent=39 // pred_check_branch
          %312 = sbr.rel (%p310) target = $region56
        $region55: #{tpu_custom_call.1} parent=39 // pred_region
          %313 = dma.done %s306, 256
        $region56: #{tpu_custom_call.1} parent=39 // pred_fallthru
          _
        %s314 = sand.u32 %s24, 1
        %s315 = scalar_lea.sflag [#allocation11], %s314
        %s316 = sand.u32 %s144, 1
        %s317 = smul.addr %s316, 4
        %s318 = scalar_lea.vmem [#allocation12], %s317
        // Predicated region
        $region57: #{tpu_custom_call.1} parent=39 // pred_check
          %p319 = pneg %p157
        $region58: #{tpu_custom_call.1} parent=39 // pred_check_branch
          %321 = sbr.rel (%p319) target = $region60
        $region59: #{tpu_custom_call.1} parent=39 // pred_region
          %322 = dma.done %s315, 64
        $region60: #{tpu_custom_call.1} parent=39 // pred_fallthru
          _
        %p323 = pneg %p52
        %p324 = pneg %p49
        %p325 = pneg %p78
        %p326 = pneg %p75
        %p327 = pneg %p99
        %p328 = pneg %p96
        %s329 = sand.u32 %s24, 1
        %s330 = scalar_lea.sflag [#allocation11], %s329
        %s331 = sand.u32 %s118, 1
        %s332 = smul.addr %s331, 16
        %s333 = scalar_lea.vmem [#allocation10], %s332
        %p334 = pneg %p131
        %p335 = pneg %p128
        %s336 = sand.u32 %s24, 1
        %s337 = scalar_lea.sflag [#allocation11], %s336
        %s338 = sand.u32 %s144, 1
        %s339 = smul.addr %s338, 4
        %s340 = scalar_lea.vmem [#allocation12], %s339
        %p341 = pneg %p157
        %p342 = pneg %p154
        %p343 = pneg %p183
        %p344 = pneg %p180
        %s345 = sand.u32 %s170, 1
        %s346 = scalar_lea.sflag [#allocation6], %s345
        %s347 = sand.u32 %s170, 1
        %s348 = smul.addr %s347, 16
        %s349 = scalar_lea.vmem [#allocation13], %s348
        %s350 = smul.u32 2, %s29
        %s351 = ssub.s32 %s28, 1
        %p352 = scmp.gt.s32.totalorder %s351, 0
        %s353 = scalar_select %p352, %s351, 0
        %p355 = scmp.eq.s32.totalorder %s28, 0
        %p356 = scmp.eq.s32.totalorder %s29, 0
        %p357 = pnand %p355, %p356
        %p358 = pneg %p357
        // Predicated region
        $region61: #{tpu_custom_call.1} parent=39 // pred_check
          _
        $region62: #{tpu_custom_call.1} parent=39 // pred_check_branch
          %360 = sbr.rel (%p357) target = $region64
        $region63: #{tpu_custom_call.1} parent=39 // pred_region
          %v361 = vld [vmem:[#allocation4] sm:$0xff]
          %v362 = vld [vmem:[#allocation4 + $0x8] sm:$0xff]
          %v363 = vpack.c.bf16 %v362, %v361
          %v364 = vld [vmem:[#allocation9] sm:$0xf]
          %v365 = vld [vmem:[#allocation9 + $0x4] sm:$0xf]
          %v366 = vld [vmem:[#allocation9 + $0x8] sm:$0xf]
          %v367 = vld [vmem:[#allocation9 + $0xc] sm:$0xf]
          %v372 = vunpack.c.l.b16 %v364
          %v373 = vunpack.c.l.b16 %v365
          %v374 = vunpack.c.l.b16 %v366
          %v375 = vunpack.c.l.b16 %v367
          %v376 = vpack.c.b16 %v373, %v372
          %v377 = vpack.c.b16 %v375, %v374
          %vm380 = vcmask 261120
          %v382 = vsel %vm380, %v363, 0
          %384 = vmatprep.subr.bf16.mxu0 0
          %385 = vmatpush1.bf16.msra.mxu0 0
          %386 = vmatprep.subr.bf16.mxu0 0
          %387 = vmatpush1.bf16.msra.mxu0 0
          %388 = vmatprep.subr.bf16.mxu0 0
          %389 = vmatpush1.bf16.msra.mxu0 0
          %390 = vmatprep.subr.bf16.mxu0 0
          %391 = vmatpush1.bf16.msra.mxu0 0
          %392 = vmatprep.subr.bf16.mxu0 0
          %393 = vmatpush1.bf16.msra.mxu0 0
          %394 = vmatprep.subr.bf16.mxu0 0
          %395 = vmatpush1.bf16.msra.mxu0 0
          %396 = vmatprep.subr.bf16.mxu0 0
          %397 = vmatpush1.bf16.msra.mxu0 %v377
          %398 = vmatprep.subr.bf16.mxu0 0
          %399 = vmatpush1.bf16.msra.mxu0 %v376
          %400 = vmatprep.subr.bf16.mxu0 0
          %401 = vmatpush2.bf16.msra.mxu0 0
          %402 = vmatprep.subr.bf16.mxu0 0
          %403 = vmatpush2.bf16.msra.mxu0 0
          %404 = vmatprep.subr.bf16.mxu0 0
          %405 = vmatpush2.bf16.msra.mxu0 0
          %406 = vmatprep.subr.bf16.mxu0 0
          %407 = vmatpush2.bf16.msra.mxu0 0
          %408 = vmatprep.subr.bf16.mxu0 0
          %409 = vmatpush2.bf16.msra.mxu0 0
          %410 = vmatprep.subr.bf16.mxu0 0
          %411 = vmatpush2.bf16.msra.mxu0 0
          %412 = vmatprep.subr.bf16.mxu0 0
          %413 = vmatpush2.bf16.msra.mxu0 0
          %414 = vmatprep.subr.bf16.mxu0 0
          %415 = vmatpush2.bf16.msra.mxu0 0
          %416 = vmatprep.mubr.bf16.mxu0 0
          %417 = vmatmul.mubr.bf16.gmra.mxu0 %v382
          %v418 = vpop.f32.mrf.mxu0
          %v419 = vadd.f32 0.0, %v418
          %v420 = vpop.f32.mrf.mxu0
          %v421 = vpop.f32.mrf.mxu0
          %v422 = vadd.f32 0.0, %v421
          %v423 = vpop.f32.mrf.mxu0
          %424 = vdwg.mxu0
          %v425 = vpack.c.bf16 %v422, %v419
          %v427 = vunpack.c.l.b16 %v425
          %v428 = vunpack.c.h.b16 %v425
          %v429 = vpack.c.b16 %v427, %v427
          %v430 = vpack.c.b16 %v428, %v428
          %vm433 = vcmask 257024
          %434 = vst.msk [vmem:[#allocation3] sm:$0xf] %vm433, %v429
          %435 = vst.msk [vmem:[#allocation3 + $0x4] sm:$0xf] %vm433, %v430
        $region64: #{tpu_custom_call.1} parent=39 // pred_fallthru
          _
        %p436 = scmp.gt.s32.totalorder %s28, 0
        %p437 = pnand %p436, %p356
        %p438 = pneg %p437
        // Predicated region
        $region65: #{tpu_custom_call.1} parent=39 // pred_check
          _
        $region66: #{tpu_custom_call.1} parent=39 // pred_check_branch
          %440 = sbr.rel (%p437) target = $region68
        $region67: #{tpu_custom_call.1} parent=39 // pred_region
          %v441 = vld [vmem:[#allocation2] sm:$0xff]
          %v442 = vld [vmem:[#allocation2 + $0x8] sm:$0xff]
          %v443 = vpack.c.bf16 %v442, %v441
          %v444 = vld [vmem:[%s309] sm:$0xf]
          %v445 = vld [vmem:[%s309 + $0x4] sm:$0xf]
          %v446 = vld [vmem:[%s309 + $0x8] sm:$0xf]
          %v447 = vld [vmem:[%s309 + $0xc] sm:$0xf]
          %v452 = vunpack.c.l.b16 %v444
          %v453 = vunpack.c.l.b16 %v445
          %v454 = vunpack.c.l.b16 %v446
          %v455 = vunpack.c.l.b16 %v447
          %v456 = vpack.c.b16 %v453, %v452
          %v457 = vpack.c.b16 %v455, %v454
          %vm460 = vcmask 261120
          %v462 = vsel %vm460, %v443, 0
          %464 = vmatprep.subr.bf16.mxu0 0
          %465 = vmatpush1.bf16.msra.mxu0 0
          %466 = vmatprep.subr.bf16.mxu0 0
          %467 = vmatpush1.bf16.msra.mxu0 0
          %468 = vmatprep.subr.bf16.mxu0 0
          %469 = vmatpush1.bf16.msra.mxu0 0
          %470 = vmatprep.subr.bf16.mxu0 0
          %471 = vmatpush1.bf16.msra.mxu0 0
          %472 = vmatprep.subr.bf16.mxu0 0
          %473 = vmatpush1.bf16.msra.mxu0 0
          %474 = vmatprep.subr.bf16.mxu0 0
          %475 = vmatpush1.bf16.msra.mxu0 0
          %476 = vmatprep.subr.bf16.mxu0 0
          %477 = vmatpush1.bf16.msra.mxu0 %v457
          %478 = vmatprep.subr.bf16.mxu0 0
          %479 = vmatpush1.bf16.msra.mxu0 %v456
          %480 = vmatprep.subr.bf16.mxu0 0
          %481 = vmatpush2.bf16.msra.mxu0 0
          %482 = vmatprep.subr.bf16.mxu0 0
          %483 = vmatpush2.bf16.msra.mxu0 0
          %484 = vmatprep.subr.bf16.mxu0 0
          %485 = vmatpush2.bf16.msra.mxu0 0
          %486 = vmatprep.subr.bf16.mxu0 0
          %487 = vmatpush2.bf16.msra.mxu0 0
          %488 = vmatprep.subr.bf16.mxu0 0
          %489 = vmatpush2.bf16.msra.mxu0 0
          %490 = vmatprep.subr.bf16.mxu0 0
          %491 = vmatpush2.bf16.msra.mxu0 0
          %492 = vmatprep.subr.bf16.mxu0 0
          %493 = vmatpush2.bf16.msra.mxu0 0
          %494 = vmatprep.subr.bf16.mxu0 0
          %495 = vmatpush2.bf16.msra.mxu0 0
          %496 = vmatprep.mubr.bf16.mxu0 0
          %497 = vmatmul.mubr.bf16.gmra.mxu0 %v462
          %v498 = vpop.f32.mrf.mxu0
          %v499 = vadd.f32 0.0, %v498
          %v500 = vpop.f32.mrf.mxu0
          %v501 = vpop.f32.mrf.mxu0
          %v502 = vadd.f32 0.0, %v501
          %v503 = vpop.f32.mrf.mxu0
          %504 = vdwg.mxu0
          %v505 = vpack.c.bf16 %v502, %v499
          %v507 = vunpack.c.l.b16 %v505
          %v508 = vunpack.c.h.b16 %v505
          %v509 = vpack.c.b16 %v507, %v507
          %v510 = vpack.c.b16 %v508, %v508
          %vm513 = vcmask 257024
          %514 = vst.msk [vmem:[#allocation3] sm:$0xf] %vm513, %v509
          %515 = vst.msk [vmem:[#allocation3 + $0x4] sm:$0xf] %vm513, %v510
        $region68: #{tpu_custom_call.1} parent=39 // pred_fallthru
          _
        %v516 = vld [vmem:[%s318] sm:$0xf]
        %v517 = vld [vmem:[#allocation7] sm:$0xf]
        %v518 = vld [vmem:[#allocation7 + $0x4] sm:$0xf]
        %v519 = vld [vmem:[#allocation3] sm:$0xf]
        %v520 = vld [vmem:[#allocation3 + $0x4] sm:$0xf]
        %v521 = vlaneseq
        %v522 = vshrl.u32 %v521, 7
        %v523 = vsub.s32 0, %v522
        %v524 = vrot.slane %v516, %v523
        %v527 = vunpack.c.l.b16 %v517
        %v528 = vunpack.c.l.b16 %v518
        %v529 = vpack.c.b16 %v528, %v527
        %v532 = vunpack.c.l.b16 %v519
        %v533 = vunpack.c.l.b16 %v520
        %v534 = vpack.c.b16 %v533, %v532
        %vm536 = vcmask 130048
        %v538 = vsel %vm536, %v529, 0
        %540 = vmatprep.subr.bf16.mxu0 0
        %541 = vmatpush1.bf16.msra.mxu0 0
        %542 = vmatprep.subr.bf16.mxu0 0
        %543 = vmatpush1.bf16.msra.mxu0 0
        %544 = vmatprep.subr.bf16.mxu0 0
        %545 = vmatpush1.bf16.msra.mxu0 0
        %546 = vmatprep.subr.bf16.mxu0 0
        %547 = vmatpush1.bf16.msra.mxu0 0
        %548 = vmatprep.subr.bf16.mxu0 0
        %549 = vmatpush1.bf16.msra.mxu0 0
        %550 = vmatprep.subr.bf16.mxu0 0
        %551 = vmatpush1.bf16.msra.mxu0 0
        %552 = vmatprep.subr.bf16.mxu0 0
        %553 = vmatpush1.bf16.msra.mxu0 0
        %554 = vmatprep.subr.bf16.mxu0 0
        %555 = vmatpush1.bf16.msra.mxu0 %v534
        %556 = vmatprep.subr.bf16.mxu0 0
        %557 = vmatpush2.bf16.msra.mxu0 0
        %558 = vmatprep.subr.bf16.mxu0 0
        %559 = vmatpush2.bf16.msra.mxu0 0
        %560 = vmatprep.subr.bf16.mxu0 0
        %561 = vmatpush2.bf16.msra.mxu0 0
        %562 = vmatprep.subr.bf16.mxu0 0
        %563 = vmatpush2.bf16.msra.mxu0 0
        %564 = vmatprep.subr.bf16.mxu0 0
        %565 = vmatpush2.bf16.msra.mxu0 0
        %566 = vmatprep.subr.bf16.mxu0 0
        %567 = vmatpush2.bf16.msra.mxu0 0
        %568 = vmatprep.subr.bf16.mxu0 0
        %569 = vmatpush2.bf16.msra.mxu0 0
        %570 = vmatprep.subr.bf16.mxu0 0
        %571 = vmatpush2.bf16.msra.mxu0 0
        %572 = vmatprep.mubr.bf16.mxu0 0
        %573 = vmatmul.mubr.bf16.gmra.mxu0 %v538
        %v574 = vpop.f32.mrf.mxu0
        %v575 = vadd.f32 %v524, %v574
        %v576 = vpop.f32.mrf.mxu0
        %v577 = vpop.f32.mrf.mxu0
        %v578 = vadd.f32 %v524, %v577
        %v579 = vpop.f32.mrf.mxu0
        %580 = vdwg.mxu0
        %vm581 = vcmp.ge.f32.partialorder %v575, 0.0
        %vm582 = vcmp.ge.f32.partialorder %v578, 0.0
        %v583 = vlaneseq
        %v584 = vshrl.u32 %v583, 7
        %v585 = vsub.s32 3, %v584
        %v586 = vrot.slane %v516, %v585
        %v587 = vmul.f32 %v586, %v575
        %v588 = vmul.f32 %v586, %v578
        %v589 = vsel %vm581, %v575, %v587
        %v590 = vsel %vm582, %v578, %v588
        %s591 = smul.u32 %s29, 16
        %s592 = scalar_lea.vmem [#allocation2], %s591
        %vm593 = vcmask 261120
        %594 = vst.msk [vmem:[%s592] sm:$0xff] %vm593, %v589
        %595 = vst.msk [vmem:[%s592 + $0x8] sm:$0xff] %vm593, %v590
        // Predicated region
        $region69: #{tpu_custom_call.1} parent=39 // pred_check
          %p596 = pneg %p356
        $region70: #{tpu_custom_call.1} parent=39 // pred_check_branch
          %598 = sbr.rel (%p596) target = $region72
        $region71: #{tpu_custom_call.1} parent=39 // pred_region
          %v599 = vld [vmem:[#allocation2] sm:$0xff]
          %v600 = vld [vmem:[#allocation2 + $0x8] sm:$0xff]
          %v601 = vsel %vm593, %v599, 0.0
          %v602 = vsel %vm593, %v600, 0.0
          %v603 = vadd.f32 %v601, %v602
          %v604 = vrot.slane %v603, 4
          %v605 = vadd.f32 %v603, %v604
          %v606 = vrot.slane %v605, 2
          %v607 = vadd.f32 %v605, %v606
          %v608 = vrot.slane %v607, 1
          %v609 = vadd.f32 %v607, %v608
          %v610 = vrcp.pop 16.0
          %v611 = vmul.f32 %v609, %v610
          %v612 = vsub.f32 %v599, %v611
          %v613 = vsub.f32 %v600, %v611
          %v614 = vmul.f32 %v612, %v612
          %v615 = vmul.f32 %v613, %v613
          %v616 = vsel %vm593, %v614, 0.0
          %v617 = vsel %vm593, %v615, 0.0
          %v618 = vadd.f32 %v616, %v617
          %v619 = vrot.slane %v618, 4
          %v620 = vadd.f32 %v618, %v619
          %v621 = vrot.slane %v620, 2
          %v622 = vadd.f32 %v620, %v621
          %v623 = vrot.slane %v622, 1
          %v624 = vadd.f32 %v622, %v623
          %v625 = vmul.f32 %v624, %v610
          %v626 = vadd.f32 %v625, 1e-05
          %v627 = vrsqrt.pop %v626
          %v628 = vmul.f32 %v516, %v627
          %v629 = vlaneseq
          %v630 = vshrl.u32 %v629, 7
          %v631 = vsub.s32 1, %v630
          %v632 = vrot.slane %v628, %v631
          %v633 = vmul.f32 %v612, %v632
          %v634 = vmul.f32 %v613, %v632
          %v635 = vlaneseq
          %v636 = vshrl.u32 %v635, 7
          %v637 = vsub.s32 2, %v636
          %v638 = vrot.slane %v516, %v637
          %v639 = vadd.f32 %v633, %v638
          %v640 = vadd.f32 %v634, %v638
          %641 = vst.msk [vmem:[#allocation2] sm:$0xff] %vm593, %v639
          %642 = vst.msk [vmem:[#allocation2 + $0x8] sm:$0xff] %vm593, %v640
          %643 = vst.msk [vmem:[%s349] sm:$0xff] %vm593, %v639
          %644 = vst.msk [vmem:[%s349 + $0x8] sm:$0xff] %vm593, %v640
        $region72: #{tpu_custom_call.1} parent=39 // pred_fallthru
          _
        %s645 = sand.u32 %s170, 1
        %s646 = scalar_lea.sflag [#allocation6], %s645
        %s647 = sand.u32 %s170, 1
        %s648 = smul.addr %s647, 16
        %s649 = scalar_lea.vmem [#allocation13], %s648
        // Predicated region
        $region73: #{tpu_custom_call.1} parent=39 // pred_check
          %p650 = pneg %p180
        $region74: #{tpu_custom_call.1} parent=39 // pred_check_branch
          %652 = sbr.rel (%p650) target = $region76
        $region75: #{tpu_custom_call.1} parent=39 // pred_region
          %s654 = ssub.s32 256, 256
          %655 = vsyncadd %s646, %s654
          %s656 = smul.addr %s28, 2
          %s657 = smul.addr %s656, 128
          %s658 = scalar_lea.hbm %s5, %s657
          %s659 = sshll.u32 %s649, 4
          %s660 = int_to_ptr.vmem [resolvable:$true] %s659
          %665 = dma.vmem_to_hbm [thread:$0]  %s660, 256, %s658, %s646, 128, 128, 8
        $region76: #{tpu_custom_call.1} parent=39 // pred_fallthru
          _
      $region40: #{tpu_custom_call.1} parent=5 // pred_fallthru
        _
      %p666 = scmp.le.s32.totalorder 2, %s19
      // Predicated region
      $region77: #{tpu_custom_call.1} parent=5 // pred_check
        %p667 = pneg %p666
      $region78: #{tpu_custom_call.1} parent=5 // pred_check_branch
        %669 = sbr.rel (%p667) target = $region80
      $region79: #{tpu_custom_call.1} parent=5 // pred_region
        %s670 = ssub.s32 %s19, 2
        // Predicated region
        $region81: #{tpu_custom_call.1} parent=79 // pred_check
          %p671 = pneg %p186
        $region82: #{tpu_custom_call.1} parent=79 // pred_check_branch
          %673 = sbr.rel (%p671) target = $region84
        $region83: #{tpu_custom_call.1} parent=79 // pred_region
          %s674 = sand.u32 %s171, 1
          %s675 = scalar_lea.sflag [#allocation6], %s674
          %s676 = sand.u32 %s171, 1
          %s677 = smul.addr %s676, 16
          %s678 = scalar_lea.vmem [#allocation13], %s677
          %679 = dma.done %s675, 256
        $region84: #{tpu_custom_call.1} parent=79 // pred_fallthru
          _
      $region80: #{tpu_custom_call.1} parent=5 // pred_fallthru
        _
    $region6: #{tpu_custom_call.1} parent=1 // loop_footer
      %s23 = sadd.s32 1, %s19
    $region7: #{tpu_custom_call.1} parent=1 // loop_footer_branch
      %18 = sbr.rel target = $region3
    $region8: #{tpu_custom_call.1} parent=1 // loop_exit
      _
    %680 = vsyncpa [#allocation5], 1
    %s681 = scalar_lea.sflag [#allocation5], 1
    %682 = vsyncpa %s681, 1
    %683 = vsyncpa [#allocation8], 1
    %684 = vsyncpa [#allocation11], 1
    %s685 = scalar_lea.sflag [#allocation11], 1
    %686 = vsyncpa %s685, 1
    %687 = vsyncpa [#allocation6], 1
    %s688 = scalar_lea.sflag [#allocation6], 1
    %689 = vsyncpa %s688, 1

</llo_original>
